<compile_context>
chip_gen: v5e
topology: v5e:2x2
jax: 0.10.0
libtpu: 0.0.40
codegen_flags: <defaults>
</compile_context>

<pallas_src>
import functools
import math

import jax
import jax.numpy as jnp
from jax import lax
from jax.experimental import pallas as pl
from jax.experimental.pallas import tpu as pltpu


# ----------------------------- kernel ---------------------------------------


def _patch_merging_kernel(x_ref, g_ref, b_ref, w_ref, o_ref, *, eps):
    """One row-tile of fused 2x2 merge + LayerNorm(4C) + Linear(4C->2C, no bias).

    x_ref: (TH, 2, Wo, 2C)   one contiguous block; axis 1 = h-parity, last dim
                             packs the (w-even | w-odd) channel pair.
    g_ref, b_ref: (2, 1, 2C) LN affine, parity re-ordered ([g0|g2], [g1|g3]).
    w_ref: (2, 2C, 2C)       reduction weight row-blocks ([W0;W2], [W1;W3]),
                             already cast to the matmul dtype (bf16 by default).
    o_ref: (TH*Wo, 2C)       merged + normalized + reduced tokens.
    """
    th, _, wo, c2 = x_ref.shape
    t = th * wo
    inv_n = 1.0 / (2 * c2)              # 1 / (4*dim)

    x = x_ref[...].astype(jnp.float32)  # (TH, 2, Wo, 2C)
    xe = x[:, 0]                        # (TH, Wo, 2C) -- static slice, addressing only
    xo = x[:, 1]

    # One-pass LayerNorm stats over the virtual 4C feature dim (f32):
    # sum(x) and sum(x*x) accumulated over both slabs, var = E[x^2] - mean^2.
    s1 = jnp.sum(xe, axis=-1, keepdims=True) + jnp.sum(xo, axis=-1, keepdims=True)
    s2 = (jnp.sum(xe * xe, axis=-1, keepdims=True)
          + jnp.sum(xo * xo, axis=-1, keepdims=True))
    mean = s1 * inv_n
    var = jnp.maximum(s2 * inv_n - mean * mean, 0.0)
    rstd = lax.rsqrt(var + eps)

    g = g_ref[...]                      # (2, 1, 2C) f32
    b = b_ref[...]
    ye = (xe - mean) * rstd * g[0] + b[0]   # (TH, Wo, 2C) f32
    yo = (xo - mean) * rstd * g[1] + b[1]

    # Cast to the matmul dtype BEFORE collapsing to 2D so any relayout copy
    # (when Wo % 8 != 0) moves half the bytes; the reshape is free when Wo % 8 == 0.
    wdt = w_ref.dtype
    ye2 = ye.astype(wdt).reshape(t, c2)
    yo2 = yo.astype(wdt).reshape(t, c2)

    # Single-pass MXU matmuls (default precision) with f32 accumulation.
    acc = jnp.dot(ye2, w_ref[0], preferred_element_type=jnp.float32)
    acc = acc + jnp.dot(yo2, w_ref[1], preferred_element_type=jnp.float32)
    o_ref[...] = acc.astype(o_ref.dtype)


# ----------------------------- sizing helpers --------------------------------


def _device_budgets():
    """Generation-aware block / VMEM budgets (v7x has only 64 MiB VMEM per TC)."""
    vmem_cap = 128 * 1024 * 1024
    try:
        info = pltpu.get_tpu_info()
        vmem_cap = int(getattr(info, "vmem_capacity_bytes", vmem_cap))
    except Exception:  # not on TPU / API shape differs -> conservative default
        pass
    if vmem_cap <= 64 * 1024 * 1024:     # v7x-class
        return dict(max_block_bytes=2 << 20, target_tokens=4096,
                    vmem_limit_bytes=32 * 1024 * 1024)
    return dict(max_block_bytes=4 << 20, target_tokens=8192,   # v5e / v6e
                vmem_limit_bytes=64 * 1024 * 1024)


def _pick_row_tile(n_rows, wo, c2, itemsize, *, max_block_bytes, target_tokens,
                   min_grid_steps=2):
    """Row tile TH for a cdiv grid (no divisibility requirement).

    Constraints:
      * per-step input block (TH * 2 * Wo * 2C * itemsize) stays near the byte
        budget (amortizes the ~0.35us grid-step overhead, fits VMEM comfortably),
      * TH*Wo is a multiple of 8 so the flat output block stays sublane-aligned,
      * at least `min_grid_steps` grid steps when possible (v7x megacore sharding
        + keeps the Pallas double-buffer pipeline active).
    """
    row_bytes = 2 * wo * c2 * itemsize
    align = 8 // math.gcd(wo, 8)
    th = min(max(1, max_block_bytes // row_bytes), max(1, target_tokens // wo))
    if min_grid_steps > 1:
        th = min(th, max(1, n_rows // min_grid_steps))
    th = max(align, (th // align) * align)
    th = min(th, n_rows)
    if th < n_rows and (th * wo) % 8 != 0:
        # No aligned multi-step tiling exists for this Wo; use one full block.
        th = n_rows
    return th


# ----------------------------- param packing ---------------------------------


def pack_patch_merging_params(gamma, beta, reduction_weight, *,
                              matmul_dtype=jnp.bfloat16):
    """Re-order LN affine + reduction weight to the packed channel order.

    Call ONCE at model init (pure constant folding) and pass the result to
    `patch_merging_noconv_packed`, so the hot path does no per-call repacking.
      even-h slab channels = [cat4 block 0 | cat4 block 2]
      odd-h  slab channels = [cat4 block 1 | cat4 block 3]
    """
    c4 = gamma.shape[0]
    c = c4 // 4
    c2 = 2 * c
    wr = jnp.transpose(reduction_weight)                      # (4C, 2C): y = v @ wr
    w0, w1, w2, w3 = wr[0:c], wr[c:2 * c], wr[2 * c:3 * c], wr[3 * c:4 * c]
    w_pair = jnp.stack([jnp.concatenate([w0, w2], axis=0),
                        jnp.concatenate([w1, w3], axis=0)]).astype(matmul_dtype)
    g0, g1, g2, g3 = gamma[0:c], gamma[c:2 * c], gamma[2 * c:3 * c], gamma[3 * c:4 * c]
    b0, b1, b2, b3 = beta[0:c], beta[c:2 * c], beta[2 * c:3 * c], beta[3 * c:4 * c]
    g_pair = jnp.stack([jnp.concatenate([g0, g2]),
                        jnp.concatenate([g1, g3])]).reshape(2, 1, c2).astype(jnp.float32)
    b_pair = jnp.stack([jnp.concatenate([b0, b2]),
                        jnp.concatenate([b1, b3])]).reshape(2, 1, c2).astype(jnp.float32)
    return g_pair, b_pair, w_pair


# ----------------------------- wrappers ---------------------------------------


def patch_merging_noconv_packed(x, input_resolution, packed_params, *, eps=1e-5,
                                out_dtype=None, max_block_bytes=None,
                                target_tokens=None, vmem_limit_bytes=None):
    """Forward of PatchMerging_noconv with pre-packed parameters.

    Args:
      x: (B, L, C) tokens, L = H*W.
      input_resolution: (H, W), both even.
      packed_params: (g_pair, b_pair, w_pair) from pack_patch_merging_params.
      out_dtype: optional output dtype (e.g. bf16 to halve the write stream on v5e).
    Returns:
      (out, out_size): out of shape (B, H*W//4, 2C); out_size = (H//2, W//2).
    """
    H, W = input_resolution
    B, L, C = x.shape
    assert L == H * W, "input feature has wrong size"
    assert H % 2 == 0 and W % 2 == 0, f"x size ({H}*{W}) are not even."
    Ho, Wo = H // 2, W // 2
    C2 = 2 * C
    out_dtype = x.dtype if out_dtype is None else out_dtype
    g_pair, b_pair, w_pair = packed_params
    assert g_pair.shape == (2, 1, C2) and b_pair.shape == (2, 1, C2)
    assert w_pair.shape == (2, C2, C2)

    budgets = _device_budgets()
    if max_block_bytes is None:
        max_block_bytes = budgets["max_block_bytes"]
    if target_tokens is None:
        target_tokens = budgets["target_tokens"]
    if vmem_limit_bytes is None:
        vmem_limit_bytes = budgets["vmem_limit_bytes"]

    # Free reshape: (B, L, C) -> (B*Ho, 2, Wo, 2C).  Axis 1 = h-parity; last dim
    # packs the (w-even | w-odd) channel pair -> the 2x2 merge costs no HBM pass.
    n_rows = B * Ho
    x_view = x.reshape(n_rows, 2, Wo, C2)

    th = _pick_row_tile(n_rows, Wo, C2, x.dtype.itemsize,
                        max_block_bytes=max_block_bytes,
                        target_tokens=target_tokens)
    grid = (pl.cdiv(n_rows, th),)   # partial last block: OOB writes are masked

    kernel = functools.partial(_patch_merging_kernel, eps=eps)
    out_flat = pl.pallas_call(
        kernel,
        out_shape=jax.ShapeDtypeStruct((n_rows * Wo, C2), out_dtype),
        grid_spec=pltpu.PrefetchScalarGridSpec(
            num_scalar_prefetch=0,
            grid=grid,
            in_specs=[
                # Both h-parities arrive in ONE fully contiguous DMA per step.
                pl.BlockSpec((th, 2, Wo, C2), lambda i: (i, 0, 0, 0)),
                pl.BlockSpec((2, 1, C2), lambda i: (0, 0, 0)),
                pl.BlockSpec((2, 1, C2), lambda i: (0, 0, 0)),
                pl.BlockSpec((2, C2, C2), lambda i: (0, 0, 0)),
            ],
            out_specs=pl.BlockSpec((th * Wo, C2), lambda i: (i, 0)),
        ),
        compiler_params=pltpu.CompilerParams(
            dimension_semantics=("parallel",),
            vmem_limit_bytes=vmem_limit_bytes,
        ),
    )(x_view, g_pair, b_pair, w_pair)

    out = out_flat.reshape(B, Ho * Wo, C2)
    return out, (Ho, Wo)


def patch_merging_noconv(x, input_resolution, gamma, beta, reduction_weight,
                         *, eps=1e-5, matmul_dtype=jnp.bfloat16, out_dtype=None,
                         **kwargs):
    """Convenience wrapper taking raw PyTorch-layout params (packs per call).

    In a real model, hoist `pack_patch_merging_params` to init and call
    `patch_merging_noconv_packed` in the hot path.
    """
    packed = pack_patch_merging_params(gamma, beta, reduction_weight,
                                       matmul_dtype=matmul_dtype)
    return patch_merging_noconv_packed(x, input_resolution, packed, eps=eps,
                                       out_dtype=out_dtype, **kwargs)


# ----------------------------- reference -------------------------------------


def _reference(x, input_resolution, gamma, beta, reduction_weight, eps=1e-5):
    H, W = input_resolution
    B, L, C = x.shape
    xv = x.reshape(B, H, W, C)
    x0 = xv[:, 0::2, 0::2, :]
    x1 = xv[:, 1::2, 0::2, :]
    x2 = xv[:, 0::2, 1::2, :]
    x3 = xv[:, 1::2, 1::2, :]
    cat = jnp.concatenate([x0, x1, x2, x3], axis=-1)          # (B, H/2, W/2, 4C)
    out_size = (cat.shape[1], cat.shape[2])
    cat = cat.reshape(B, -1, 4 * C).astype(jnp.float32)
    mean = jnp.mean(cat, axis=-1, keepdims=True)
    var = jnp.mean((cat - mean) ** 2, axis=-1, keepdims=True)
    y = (cat - mean) * lax.rsqrt(var + eps) * gamma + beta
    y = jnp.einsum("blk,kd->bld", y, jnp.transpose(reduction_weight),
                   precision=jax.lax.Precision.HIGHEST)
    return y.astype(x.dtype), out_size


# ----------------------------- main -------------------------------------------


if __name__ == "__main__":
    key = jax.random.PRNGKey(0)
    kx, kg, kb, kw = jax.random.split(key, 4)

    B, dim, H, W = 2, 32, 16, 16
    L = H * W
    x = jax.random.normal(kx, (B, L, dim), dtype=jnp.float32)
    gamma = 1.0 + 0.1 * jax.random.normal(kg, (4 * dim,), dtype=jnp.float32)
    beta = 0.1 * jax.random.normal(kb, (4 * dim,), dtype=jnp.float32)
    w_red = jax.random.normal(kw, (2 * dim, 4 * dim), dtype=jnp.float32) / jnp.sqrt(4.0 * dim)

    # Pack params once (init-time work), then run the kernel.
    packed = pack_patch_merging_params(gamma, beta, w_red, matmul_dtype=jnp.bfloat16)
    out, out_size = patch_merging_noconv_packed(x, (H, W), packed)
    out = jax.block_until_ready(out)

    ref, ref_size = _reference(x, (H, W), gamma, beta, w_red)
    assert out.shape == (B, L // 4, 2 * dim), out.shape
    assert out_size == (H // 2, W // 2) and ref_size == out_size
    # bf16 MXU inputs with f32 accumulation -> a few 1e-3 absolute error expected
    # vs the fp32 HIGHEST reference (outputs are O(1) after LayerNorm).
    err = float(jnp.max(jnp.abs(out.astype(jnp.float32) - ref.astype(jnp.float32))))
    assert err < 5e-2, err

    print("KERNEL_OK")
</pallas_src>

<mosaic_0001>
module attributes {stable_mosaic.version = 11 : i64} {
  func.func @_patch_merging_kernel(%arg0: i32, %arg1: memref<8x2x8x64xf32, #tpu.memory_space<vmem>>, %arg2: memref<2x1x64xf32, #tpu.memory_space<vmem>>, %arg3: memref<2x1x64xf32, #tpu.memory_space<vmem>>, %arg4: memref<2x64x64xbf16, #tpu.memory_space<vmem>>, %arg5: memref<64x64xf32, #tpu.memory_space<vmem>>) attributes {dimension_semantics = [#tpu.dimension_semantics<parallel>], iteration_bounds = array<i64: 2>, scalar_prefetch = 0 : i64, scratch_operands = 0 : i64, tpu.core_type = #tpu.core_type<tc>, window_params = [{transform_indices = @transform_0, window_bounds = array<i64: 8, 2, 8, 64>}, {pipeline_mode = #tpu.pipeline_mode<synchronous>, transform_indices = @transform_1, window_bounds = array<i64: 2, 1, 64>}, {pipeline_mode = #tpu.pipeline_mode<synchronous>, transform_indices = @transform_2, window_bounds = array<i64: 2, 1, 64>}, {pipeline_mode = #tpu.pipeline_mode<synchronous>, transform_indices = @transform_3, window_bounds = array<i64: 2, 64, 64>}, {transform_indices = @transform_4, window_bounds = array<i64: 64, 64>}]} {
    %c0 = arith.constant 0 : index
    %c0_0 = arith.constant 0 : index
    %c0_1 = arith.constant 0 : index
    %c0_2 = arith.constant 0 : index
    %0 = vector.load %arg1[%c0, %c0_0, %c0_1, %c0_2] : memref<8x2x8x64xf32, #tpu.memory_space<vmem>>, vector<8x2x8x64xf32>
    %1 = vector.extract_strided_slice %0 {offsets = [0, 0, 0, 0], sizes = [8, 1, 8, 64], strides = [1, 1, 1, 1]} : vector<8x2x8x64xf32> to vector<8x1x8x64xf32>
    %2 = vector.shape_cast %1 : vector<8x1x8x64xf32> to vector<8x8x64xf32>
    %3 = vector.extract_strided_slice %0 {offsets = [0, 1, 0, 0], sizes = [8, 1, 8, 64], strides = [1, 1, 1, 1]} : vector<8x2x8x64xf32> to vector<8x1x8x64xf32>
    %4 = vector.shape_cast %3 : vector<8x1x8x64xf32> to vector<8x8x64xf32>
    %cst = arith.constant dense<0.000000e+00> : vector<8x8xf32>
    %5 = vector.multi_reduction <add>, %2, %cst [2] : vector<8x8x64xf32> to vector<8x8xf32>
    %6 = vector.shape_cast %5 : vector<8x8xf32> to vector<8x8x1xf32>
    %cst_3 = arith.constant dense<0.000000e+00> : vector<8x8xf32>
    %7 = vector.multi_reduction <add>, %4, %cst_3 [2] : vector<8x8x64xf32> to vector<8x8xf32>
    %8 = vector.shape_cast %7 : vector<8x8xf32> to vector<8x8x1xf32>
    %9 = arith.addf %6, %8 : vector<8x8x1xf32>
    %10 = arith.mulf %2, %2 : vector<8x8x64xf32>
    %cst_4 = arith.constant dense<0.000000e+00> : vector<8x8xf32>
    %11 = vector.multi_reduction <add>, %10, %cst_4 [2] : vector<8x8x64xf32> to vector<8x8xf32>
    %12 = vector.shape_cast %11 : vector<8x8xf32> to vector<8x8x1xf32>
    %13 = arith.mulf %4, %4 : vector<8x8x64xf32>
    %cst_5 = arith.constant dense<0.000000e+00> : vector<8x8xf32>
    %14 = vector.multi_reduction <add>, %13, %cst_5 [2] : vector<8x8x64xf32> to vector<8x8xf32>
    %15 = vector.shape_cast %14 : vector<8x8xf32> to vector<8x8x1xf32>
    %16 = arith.addf %12, %15 : vector<8x8x1xf32>
    %cst_6 = arith.constant 7.812500e-03 : f32
    %17 = vector.broadcast %cst_6 : f32 to vector<8x8x1xf32>
    %18 = arith.mulf %9, %17 : vector<8x8x1xf32>
    %cst_7 = arith.constant 7.812500e-03 : f32
    %19 = vector.broadcast %cst_7 : f32 to vector<8x8x1xf32>
    %20 = arith.mulf %16, %19 : vector<8x8x1xf32>
    %21 = arith.mulf %18, %18 : vector<8x8x1xf32>
    %22 = arith.subf %20, %21 : vector<8x8x1xf32>
    %cst_8 = arith.constant 0.000000e+00 : f32
    %23 = vector.broadcast %cst_8 : f32 to vector<8x8x1xf32>
    %24 = arith.maximumf %22, %23 : vector<8x8x1xf32>
    %cst_9 = arith.constant 9.99999974E-6 : f32
    %25 = vector.broadcast %cst_9 : f32 to vector<8x8x1xf32>
    %26 = arith.addf %24, %25 : vector<8x8x1xf32>
    %27 = math.rsqrt %26 : vector<8x8x1xf32>
    %c0_10 = arith.constant 0 : index
    %c0_11 = arith.constant 0 : index
    %c0_12 = arith.constant 0 : index
    %28 = vector.load %arg2[%c0_10, %c0_11, %c0_12] : memref<2x1x64xf32, #tpu.memory_space<vmem>>, vector<2x1x64xf32>
    %c0_13 = arith.constant 0 : index
    %c0_14 = arith.constant 0 : index
    %c0_15 = arith.constant 0 : index
    %29 = vector.load %arg3[%c0_13, %c0_14, %c0_15] : memref<2x1x64xf32, #tpu.memory_space<vmem>>, vector<2x1x64xf32>
    %30 = vector.broadcast %18 : vector<8x8x1xf32> to vector<8x8x64xf32>
    %31 = arith.subf %2, %30 : vector<8x8x64xf32>
    %32 = vector.broadcast %27 : vector<8x8x1xf32> to vector<8x8x64xf32>
    %33 = arith.mulf %31, %32 : vector<8x8x64xf32>
    %34 = vector.extract_strided_slice %28 {offsets = [0, 0, 0], sizes = [1, 1, 64], strides = [1, 1, 1]} : vector<2x1x64xf32> to vector<1x1x64xf32>
    %35 = vector.shape_cast %34 : vector<1x1x64xf32> to vector<1x64xf32>
    %36 = vector.shape_cast %35 : vector<1x64xf32> to vector<1x1x64xf32>
    %37 = vector.broadcast %36 : vector<1x1x64xf32> to vector<8x8x64xf32>
    %38 = arith.mulf %33, %37 : vector<8x8x64xf32>
    %39 = vector.extract_strided_slice %29 {offsets = [0, 0, 0], sizes = [1, 1, 64], strides = [1, 1, 1]} : vector<2x1x64xf32> to vector<1x1x64xf32>
    %40 = vector.shape_cast %39 : vector<1x1x64xf32> to vector<1x64xf32>
    %41 = vector.shape_cast %40 : vector<1x64xf32> to vector<1x1x64xf32>
    %42 = vector.broadcast %41 : vector<1x1x64xf32> to vector<8x8x64xf32>
    %43 = arith.addf %38, %42 : vector<8x8x64xf32>
    %44 = vector.broadcast %18 : vector<8x8x1xf32> to vector<8x8x64xf32>
    %45 = arith.subf %4, %44 : vector<8x8x64xf32>
    %46 = vector.broadcast %27 : vector<8x8x1xf32> to vector<8x8x64xf32>
    %47 = arith.mulf %45, %46 : vector<8x8x64xf32>
    %48 = vector.extract_strided_slice %28 {offsets = [1, 0, 0], sizes = [1, 1, 64], strides = [1, 1, 1]} : vector<2x1x64xf32> to vector<1x1x64xf32>
    %49 = vector.shape_cast %48 : vector<1x1x64xf32> to vector<1x64xf32>
    %50 = vector.shape_cast %49 : vector<1x64xf32> to vector<1x1x64xf32>
    %51 = vector.broadcast %50 : vector<1x1x64xf32> to vector<8x8x64xf32>
    %52 = arith.mulf %47, %51 : vector<8x8x64xf32>
    %53 = vector.extract_strided_slice %29 {offsets = [1, 0, 0], sizes = [1, 1, 64], strides = [1, 1, 1]} : vector<2x1x64xf32> to vector<1x1x64xf32>
    %54 = vector.shape_cast %53 : vector<1x1x64xf32> to vector<1x64xf32>
    %55 = vector.shape_cast %54 : vector<1x64xf32> to vector<1x1x64xf32>
    %56 = vector.broadcast %55 : vector<1x1x64xf32> to vector<8x8x64xf32>
    %57 = arith.addf %52, %56 : vector<8x8x64xf32>
    %58 = arith.truncf %43 : vector<8x8x64xf32> to vector<8x8x64xbf16>
    %59 = vector.shape_cast %58 : vector<8x8x64xbf16> to vector<64x64xbf16>
    %60 = arith.truncf %57 : vector<8x8x64xf32> to vector<8x8x64xbf16>
    %61 = vector.shape_cast %60 : vector<8x8x64xbf16> to vector<64x64xbf16>
    %c0_16 = arith.constant 0 : index
    %c0_17 = arith.constant 0 : index
    %c0_18 = arith.constant 0 : index
    %62 = vector.load %arg4[%c0_16, %c0_17, %c0_18] : memref<2x64x64xbf16, #tpu.memory_space<vmem>>, vector<1x64x64xbf16>
    %63 = vector.shape_cast %62 : vector<1x64x64xbf16> to vector<64x64xbf16>
    %cst_19 = arith.constant dense<0.000000e+00> : vector<64x64xf32>
    %64 = tpu.matmul %59, %63, %cst_19 {dimension_numbers = #tpu.dot_dimension_numbers<[1], [0], [0], [1], [0, 0, 1, 1], [], []>} : vector<64x64xbf16>, vector<64x64xbf16>, vector<64x64xf32> -> vector<64x64xf32>
    %c1 = arith.constant 1 : index
    %c0_20 = arith.constant 0 : index
    %c0_21 = arith.constant 0 : index
    %65 = vector.load %arg4[%c1, %c0_20, %c0_21] : memref<2x64x64xbf16, #tpu.memory_space<vmem>>, vector<1x64x64xbf16>
    %66 = vector.shape_cast %65 : vector<1x64x64xbf16> to vector<64x64xbf16>
    %cst_22 = arith.constant dense<0.000000e+00> : vector<64x64xf32>
    %67 = tpu.matmul %61, %66, %cst_22 {dimension_numbers = #tpu.dot_dimension_numbers<[1], [0], [0], [1], [0, 0, 1, 1], [], []>} : vector<64x64xbf16>, vector<64x64xbf16>, vector<64x64xf32> -> vector<64x64xf32>
    %68 = arith.addf %64, %67 : vector<64x64xf32>
    %c0_23 = arith.constant 0 : index
    %c0_24 = arith.constant 0 : index
    %69 = vector.load %arg5[%c0_23, %c0_24] : memref<64x64xf32, #tpu.memory_space<vmem>>, vector<64x64xf32>
    tpu.vector_store %arg5[%c0_23, %c0_24], %68 {strides = array<i32>} : memref<64x64xf32, #tpu.memory_space<vmem>>, vector<64x64xf32>,
    return
  }
  func.func @transform_0(%arg0: i32) -> (i32, i32, i32, i32) {
    %c0_i32 = arith.constant 0 : i32
    %c0_i32_0 = arith.constant 0 : i32
    %c0_i32_1 = arith.constant 0 : i32
    %c0_i32_2 = arith.constant 0 : i32
    return %arg0, %c0_i32, %c0_i32_0, %c0_i32_1 : i32, i32, i32, i32
  }
  func.func @transform_1(%arg0: i32) -> (i32, i32, i32) {
    %c0_i32 = arith.constant 0 : i32
    %c0_i32_0 = arith.constant 0 : i32
    %c0_i32_1 = arith.constant 0 : i32
    %c0_i32_2 = arith.constant 0 : i32
    return %c0_i32, %c0_i32_0, %c0_i32_1 : i32, i32, i32
  }
  func.func @transform_2(%arg0: i32) -> (i32, i32, i32) {
    %c0_i32 = arith.constant 0 : i32
    %c0_i32_0 = arith.constant 0 : i32
    %c0_i32_1 = arith.constant 0 : i32
    %c0_i32_2 = arith.constant 0 : i32
    return %c0_i32, %c0_i32_0, %c0_i32_1 : i32, i32, i32
  }
  func.func @transform_3(%arg0: i32) -> (i32, i32, i32) {
    %c0_i32 = arith.constant 0 : i32
    %c0_i32_0 = arith.constant 0 : i32
    %c0_i32_1 = arith.constant 0 : i32
    %c0_i32_2 = arith.constant 0 : i32
    return %c0_i32, %c0_i32_0, %c0_i32_1 : i32, i32, i32
  }
  func.func @transform_4(%arg0: i32) -> (i32, i32) {
    %c0_i32 = arith.constant 0 : i32
    %c0_i32_0 = arith.constant 0 : i32
    return %arg0, %c0_i32 : i32, i32
  }
}

</mosaic_0001>

<llo_original>
// kernel: tpu_custom_call.1
$region0: #{tpu_custom_call.1}
  #allocation0 [shape = 'u32[]', space=smem, size = 0x4, offset = 0x4, fixed_abs, tag = 'smem constant byte address 0x4 - core index']
  #allocation1 [shape = 'u32[72,128]{1,0:T(1,128)}', space=vmem, size = 0x9000, scoped, tag = 'internal scratch']
  %s0 = inlined_call_operand.hbm [shape: f32[16,2,8,64], index: 0, kind: input, shape index: {}]
  %s1 = inlined_call_operand.hbm [shape: f32[2,1,64], index: 1, kind: input, shape index: {}]
  %s2 = inlined_call_operand.hbm [shape: f32[2,1,64], index: 2, kind: input, shape index: {}]
  %s3 = inlined_call_operand.hbm [shape: bf16[2,64,64], index: 3, kind: input, shape index: {}]
  %s4 = inlined_call_operand.vmem [shape: f32[128,64], index: 4, kind: output, shape index: {}]
  %s5 = sld [smem:[#allocation0]]
  $region65: #{tpu_custom_call.1} parent=0
    _
  %s7 = ssub.s32 1, %s5
  %s8 = scalar_select 0, %s7, %s5
  $region1: #{tpu_custom_call.1} parent=0
    #allocation2 [shape = 'u8[131072]{0}', space=vmem, size = 0x20000, scoped, tag = 'input window, operand 0']
    #allocation3 [shape = 's32[2]{0}', space=sflag, size = 0x8, scoped, tag = 'scoped memory for tpu_custom_call.1']
    #allocation4 [shape = 'u8[1024]{0}', space=vmem, size = 0x400, scoped, tag = 'input window, operand 1, single buffered']
    #allocation5 [shape = 's32[1]{0}', space=sflag, size = 0x4, scoped, tag = 'scoped memory for tpu_custom_call.1']
    #allocation6 [shape = 'u8[1024]{0}', space=vmem, size = 0x400, scoped, tag = 'input window, operand 2, single buffered']
    #allocation7 [shape = 'u8[32768]{0}', space=vmem, size = 0x8000, scoped, tag = 'input window, operand 3, single buffered']
    #allocation8 [shape = 's32[1]{0}', space=sflag, size = 0x4, scoped, tag = 'scoped memory for tpu_custom_call.1']
    %9 = vsyncpa [#allocation3], 0
    %s10 = scalar_lea.sflag [#allocation3], 1
    %11 = vsyncpa %s10, 0
    %12 = vsyncpa [#allocation5], 0
    %13 = vsyncpa [#allocation8], 0
    loop: start=0, step=1, limit=4
    $region2: #{tpu_custom_call.1} parent=1 // loop_pre_header
      _
    $region3: #{tpu_custom_call.1} parent=1 // loop_header
      %s15 = sphi 0, %s19
      %p16 = scmp.ge.s32.totalorder %s15, 4
      %s25 = sphi 0, %s27
      %s28 = sphi 0, %s25
      %s29 = sphi 0, %s28
      %s45 = sphi 0, %s29
      %s49 = sphi 0, %s49
      %s51 = sphi 0, %s49
      %s52 = sphi 0, %s51
      %s66 = sphi 0, %s52
      %s70 = sphi 0, %s70
      %s72 = sphi 0, %s70
      %s73 = sphi 0, %s72
      %s87 = sphi 0, %s73
      %s91 = sphi 0, %s91
      %s93 = sphi 0, %s91
      %s94 = sphi 0, %s93
      %s108 = sphi 0, %s94
      %s114 = sphi 0, %s116
      %s117 = sphi 0, %s114
      %s118 = sphi 0, %s117
      %s134 = sphi 0, %s118
    $region4: #{tpu_custom_call.1} parent=1 // loop_header_branch
      %18 = sbr.rel (%p16) target = $region8
    $region5: #{tpu_custom_call.1} parent=1 // loop_body
      %s20 = ssub.s32 %s15, 1
      %s21 = ssub.s32 %s15, 2
      %s22 = sadd.s32 %s15, 1
      %s23 = ssub.s32 %s15, %s22
      %p24 = scmp.eq.s32.totalorder %s23, 0
      %s26 = sadd.s32 %s25, 1
      %s27 = scalar_select %p24, %s25, %s26
      %p30 = pneg %p24
      %p31 = scmp.eq.s32.totalorder %s15, 1
      %p32 = por %p30, %p31
      %p33 = scmp.ne.s32.totalorder %s25, %s28
      %p34 = scmp.eq.s32.totalorder %s15, 0
      %p35 = por %p33, %p34
      %p36 = scmp.ne.s32.totalorder %s25, %s28
      %p37 = scmp.eq.s32.totalorder %s20, 1
      %p38 = por %p36, %p37
      %p39 = scmp.ne.s32.totalorder %s28, %s29
      %p40 = scmp.eq.s32.totalorder %s20, 0
      %p41 = por %p39, %p40
      %p42 = scmp.ne.s32.totalorder %s28, %s29
      %p43 = scmp.eq.s32.totalorder %s21, 1
      %p44 = por %p42, %p43
      %p46 = scmp.ne.s32.totalorder %s29, %s45
      %p47 = scmp.eq.s32.totalorder %s21, 0
      %p48 = por %p46, %p47
      %s50 = sadd.s32 %s49, 1
      %p53 = scmp.eq.s32.totalorder %s15, 1
      %p54 = scmp.ne.s32.totalorder %s49, %s51
      %p55 = scmp.eq.s32.totalorder %s15, 0
      %p56 = por %p54, %p55
      %p57 = scmp.ne.s32.totalorder %s49, %s51
      %p58 = scmp.eq.s32.totalorder %s20, 1
      %p59 = por %p57, %p58
      %p60 = scmp.ne.s32.totalorder %s51, %s52
      %p61 = scmp.eq.s32.totalorder %s20, 0
      %p62 = por %p60, %p61
      %p63 = scmp.ne.s32.totalorder %s51, %s52
      %p64 = scmp.eq.s32.totalorder %s21, 1
      %p65 = por %p63, %p64
      %p67 = scmp.ne.s32.totalorder %s52, %s66
      %p68 = scmp.eq.s32.totalorder %s21, 0
      %p69 = por %p67, %p68
      %s71 = sadd.s32 %s70, 1
      %p74 = scmp.eq.s32.totalorder %s15, 1
      %p75 = scmp.ne.s32.totalorder %s70, %s72
      %p76 = scmp.eq.s32.totalorder %s15, 0
      %p77 = por %p75, %p76
      %p78 = scmp.ne.s32.totalorder %s70, %s72
      %p79 = scmp.eq.s32.totalorder %s20, 1
      %p80 = por %p78, %p79
      %p81 = scmp.ne.s32.totalorder %s72, %s73
      %p82 = scmp.eq.s32.totalorder %s20, 0
      %p83 = por %p81, %p82
      %p84 = scmp.ne.s32.totalorder %s72, %s73
      %p85 = scmp.eq.s32.totalorder %s21, 1
      %p86 = por %p84, %p85
      %p88 = scmp.ne.s32.totalorder %s73, %s87
      %p89 = scmp.eq.s32.totalorder %s21, 0
      %p90 = por %p88, %p89
      %s92 = sadd.s32 %s91, 1
      %p95 = scmp.eq.s32.totalorder %s15, 1
      %p96 = scmp.ne.s32.totalorder %s91, %s93
      %p97 = scmp.eq.s32.totalorder %s15, 0
      %p98 = por %p96, %p97
      %p99 = scmp.ne.s32.totalorder %s91, %s93
      %p100 = scmp.eq.s32.totalorder %s20, 1
      %p101 = por %p99, %p100
      %p102 = scmp.ne.s32.totalorder %s93, %s94
      %p103 = scmp.eq.s32.totalorder %s20, 0
      %p104 = por %p102, %p103
      %p105 = scmp.ne.s32.totalorder %s93, %s94
      %p106 = scmp.eq.s32.totalorder %s21, 1
      %p107 = por %p105, %p106
      %p109 = scmp.ne.s32.totalorder %s94, %s108
      %p110 = scmp.eq.s32.totalorder %s21, 0
      %p111 = por %p109, %p110
      %s112 = ssub.s32 %s15, %s22
      %p113 = scmp.eq.s32.totalorder %s112, 0
      %s115 = sadd.s32 %s114, 1
      %s116 = scalar_select %p113, %s114, %s115
      %p119 = pneg %p113
      %p120 = scmp.eq.s32.totalorder %s15, 1
      %p121 = por %p119, %p120
      %p122 = scmp.ne.s32.totalorder %s114, %s117
      %p123 = scmp.eq.s32.totalorder %s15, 0
      %p124 = por %p122, %p123
      %p125 = scmp.ne.s32.totalorder %s114, %s117
      %p126 = scmp.eq.s32.totalorder %s20, 1
      %p127 = por %p125, %p126
      %p128 = scmp.ne.s32.totalorder %s117, %s118
      %p129 = scmp.eq.s32.totalorder %s20, 0
      %p130 = por %p128, %p129
      %p131 = scmp.ne.s32.totalorder %s117, %s118
      %p132 = scmp.eq.s32.totalorder %s21, 1
      %p133 = por %p131, %p132
      %p135 = scmp.ne.s32.totalorder %s118, %s134
      %p136 = scmp.eq.s32.totalorder %s21, 0
      %p137 = por %p135, %p136
      %p138 = scmp.le.s32.totalorder 1, %s15
      %p139 = scmp.lt.s32.totalorder %s15, 3
      %p140 = pnand %p138, %p139
      %p141 = pneg %p140
      // Predicated region
      $region9: #{tpu_custom_call.1} parent=5 // pred_check
        _
      $region10: #{tpu_custom_call.1} parent=5 // pred_check_branch
        %143 = sbr.rel (%p140) target = $region12
      $region11: #{tpu_custom_call.1} parent=5 // pred_region
        %s144 = ssub.s32 %s15, 1
        // Predicated region
        $region13: #{tpu_custom_call.1} parent=11 // pred_check
          %p145 = pneg %p62
        $region14: #{tpu_custom_call.1} parent=11 // pred_check_branch
          %147 = sbr.rel (%p145) target = $region16
        $region15: #{tpu_custom_call.1} parent=11 // pred_region
          %149 = vsyncadd [#allocation5], 0
          %s150 = sshll.u32 %s1, 4
          %s151 = int_to_ptr.hbm [resolvable:$true] %s150
          %s152 = sshll.u32 [#allocation4], 4
          %s153 = int_to_ptr.vmem [resolvable:$true] %s152
          %158 = dma.hbm_to_vmem [thread:$0]  %s151, 32, %s153, [#allocation5], 16, 16, 1
        $region16: #{tpu_custom_call.1} parent=11 // pred_fallthru
          _
        // Predicated region
        $region17: #{tpu_custom_call.1} parent=11 // pred_check
          %p159 = pneg %p83
        $region18: #{tpu_custom_call.1} parent=11 // pred_check_branch
          %161 = sbr.rel (%p159) target = $region20
        $region19: #{tpu_custom_call.1} parent=11 // pred_region
          %163 = vsyncadd [#allocation5], 0
          %s164 = sshll.u32 %s2, 4
          %s165 = int_to_ptr.hbm [resolvable:$true] %s164
          %s166 = sshll.u32 [#allocation6], 4
          %s167 = int_to_ptr.vmem [resolvable:$true] %s166
          %172 = dma.hbm_to_vmem [thread:$0]  %s165, 32, %s167, [#allocation5], 16, 16, 1
        $region20: #{tpu_custom_call.1} parent=11 // pred_fallthru
          _
        // Predicated region
        $region21: #{tpu_custom_call.1} parent=11 // pred_check
          %p173 = pneg %p104
        $region22: #{tpu_custom_call.1} parent=11 // pred_check_branch
          %175 = sbr.rel (%p173) target = $region24
        $region23: #{tpu_custom_call.1} parent=11 // pred_region
          %177 = vsyncadd [#allocation8], 0
          %s178 = sshll.u32 %s3, 4
          %s179 = int_to_ptr.hbm [resolvable:$true] %s178
          %s180 = sshll.u32 [#allocation7], 4
          %s181 = int_to_ptr.vmem [resolvable:$true] %s180
          %186 = dma.hbm_to_vmem [thread:$0]  %s179, 1024, %s181, [#allocation8], 64, 64, 4
        $region24: #{tpu_custom_call.1} parent=11 // pred_fallthru
          _
      $region12: #{tpu_custom_call.1} parent=5 // pred_fallthru
        _
      %p187 = scmp.lt.s32.totalorder %s15, 2
      // Predicated region
      $region25: #{tpu_custom_call.1} parent=5 // pred_check
        %p188 = pneg %p187
      $region26: #{tpu_custom_call.1} parent=5 // pred_check_branch
        %190 = sbr.rel (%p188) target = $region28
      $region27: #{tpu_custom_call.1} parent=5 // pred_region
        // Predicated region
        $region29: #{tpu_custom_call.1} parent=27 // pred_check
          %p191 = pneg %p35
        $region30: #{tpu_custom_call.1} parent=27 // pred_check_branch
          %193 = sbr.rel (%p191) target = $region32
        $region31: #{tpu_custom_call.1} parent=27 // pred_region
          %s194 = sand.u32 %s25, 1
          %s195 = scalar_lea.sflag [#allocation3], %s194
          %s196 = sand.u32 %s25, 1
          %s197 = smul.addr %s196, 128
          %s198 = scalar_lea.vmem [#allocation2], %s197
          %s199 = smul.u32 8, %s15
          %201 = vsyncadd %s195, 0
          %s202 = smul.addr %s199, 2
          %s203 = smul.addr %s202, 8
          %s204 = scalar_lea.hbm %s0, %s203
          %s205 = sshll.u32 %s204, 4
          %s206 = int_to_ptr.hbm [resolvable:$true] %s205
          %s207 = sshll.u32 %s198, 4
          %s208 = int_to_ptr.vmem [resolvable:$true] %s207
          %213 = dma.hbm_to_vmem [thread:$0]  %s206, 2048, %s208, %s195, 128, 128, 8
        $region32: #{tpu_custom_call.1} parent=27 // pred_fallthru
          _
      $region28: #{tpu_custom_call.1} parent=5 // pred_fallthru
        _
      %p214 = scmp.le.s32.totalorder 1, %s15
      %p215 = scmp.lt.s32.totalorder %s15, 3
      %p216 = pnand %p214, %p215
      %p217 = pneg %p216
      // Predicated region
      $region33: #{tpu_custom_call.1} parent=5 // pred_check
        _
      $region34: #{tpu_custom_call.1} parent=5 // pred_check_branch
        %219 = sbr.rel (%p216) target = $region36
      $region35: #{tpu_custom_call.1} parent=5 // pred_region
        %s220 = ssub.s32 %s15, 1
        %s221 = sand.u32 %s28, 1
        %s222 = scalar_lea.sflag [#allocation3], %s221
        %s223 = sand.u32 %s28, 1
        %s224 = smul.addr %s223, 128
        %s225 = scalar_lea.vmem [#allocation2], %s224
        // Predicated region
        $region37: #{tpu_custom_call.1} parent=35 // pred_check
          %p226 = pneg %p41
        $region38: #{tpu_custom_call.1} parent=35 // pred_check_branch
          %228 = sbr.rel (%p226) target = $region40
        $region39: #{tpu_custom_call.1} parent=35 // pred_region
          %230 = dma.done %s222, 2048
        $region40: #{tpu_custom_call.1} parent=35 // pred_fallthru
          _
        // Predicated region
        $region41: #{tpu_custom_call.1} parent=35 // pred_check
          %p231 = pneg %p62
        $region42: #{tpu_custom_call.1} parent=35 // pred_check_branch
          %233 = sbr.rel (%p231) target = $region44
        $region43: #{tpu_custom_call.1} parent=35 // pred_region
          %235 = dma.done [#allocation5], 32
        $region44: #{tpu_custom_call.1} parent=35 // pred_fallthru
          _
        // Predicated region
        $region45: #{tpu_custom_call.1} parent=35 // pred_check
          %p236 = pneg %p83
        $region46: #{tpu_custom_call.1} parent=35 // pred_check_branch
          %238 = sbr.rel (%p236) target = $region48
        $region47: #{tpu_custom_call.1} parent=35 // pred_region
          %240 = dma.done [#allocation5], 32
        $region48: #{tpu_custom_call.1} parent=35 // pred_fallthru
          _
        // Predicated region
        $region49: #{tpu_custom_call.1} parent=35 // pred_check
          %p241 = pneg %p104
        $region50: #{tpu_custom_call.1} parent=35 // pred_check_branch
          %243 = sbr.rel (%p241) target = $region52
        $region51: #{tpu_custom_call.1} parent=35 // pred_region
          %245 = dma.done [#allocation8], 1024
        $region52: #{tpu_custom_call.1} parent=35 // pred_fallthru
          _
        %s246 = sand.u32 %s28, 1
        %s247 = scalar_lea.sflag [#allocation3], %s246
        %s248 = sand.u32 %s28, 1
        %s249 = smul.addr %s248, 128
        %s250 = scalar_lea.vmem [#allocation2], %s249
        %p251 = pneg %p41
        %p252 = pneg %p38
        %p253 = pneg %p62
        %p254 = pneg %p59
        %p255 = pneg %p83
        %p256 = pneg %p80
        %p257 = pneg %p104
        %p258 = pneg %p101
        %p259 = pneg %p130
        %p260 = pneg %p127
        %s261 = smul.u32 8, %s20
        %p262 = scmp.lt.s32.totalorder %s261, 15
        %s263 = scalar_select %p262, %s261, 15
        %s264 = smul.addr %s263, 8
        %s265 = scalar_lea.vmem %s4, %s264
        %s266 = smul.u32 8, %s20
        %s267 = smul.u32 8, %s20
        %p268 = scmp.lt.s32.totalorder %s267, 15
        %s269 = scalar_select %p268, %s267, 15
        %s270 = smul.addr %s269, 8
        %s271 = scalar_lea.vmem %s4, %s270
        %s272 = smul.u32 8, %s20
        %v274 = vld [vmem:[%s225] sm:$0xff]
        %v275 = vld [vmem:[%s225 + $0x8] sm:$0xff]
        %v276 = vld [vmem:[%s225 + $0x10] sm:$0xff]
        %v277 = vld [vmem:[%s225 + $0x18] sm:$0xff]
        %v278 = vld [vmem:[%s225 + $0x20] sm:$0xff]
        %v279 = vld [vmem:[%s225 + $0x28] sm:$0xff]
        %v280 = vld [vmem:[%s225 + $0x30] sm:$0xff]
        %v281 = vld [vmem:[%s225 + $0x38] sm:$0xff]
        %v282 = vld [vmem:[%s225 + $0x40] sm:$0xff]
        %v283 = vld [vmem:[%s225 + $0x48] sm:$0xff]
        %v284 = vld [vmem:[%s225 + $0x50] sm:$0xff]
        %v285 = vld [vmem:[%s225 + $0x58] sm:$0xff]
        %v286 = vld [vmem:[%s225 + $0x60] sm:$0xff]
        %v287 = vld [vmem:[%s225 + $0x68] sm:$0xff]
        %v288 = vld [vmem:[%s225 + $0x70] sm:$0xff]
        %v289 = vld [vmem:[%s225 + $0x78] sm:$0xff]
        %vm290 = vcmask 523264
        %v291 = vsel %vm290, %v274, 0.0
        %292 = vadd.xlane.f32.xlu0 %v291
        %v293 = vpop.xlane.xlu0 %292
        %v294 = vsel %vm290, %v276, 0.0
        %295 = vadd.xlane.f32.xlu0 %v294
        %v296 = vpop.xlane.xlu0 %295
        %v297 = vsel %vm290, %v278, 0.0
        %298 = vadd.xlane.f32.xlu0 %v297
        %v299 = vpop.xlane.xlu0 %298
        %v300 = vsel %vm290, %v280, 0.0
        %301 = vadd.xlane.f32.xlu0 %v300
        %v302 = vpop.xlane.xlu0 %301
        %v303 = vsel %vm290, %v282, 0.0
        %304 = vadd.xlane.f32.xlu0 %v303
        %v305 = vpop.xlane.xlu0 %304
        %v306 = vsel %vm290, %v284, 0.0
        %307 = vadd.xlane.f32.xlu0 %v306
        %v308 = vpop.xlane.xlu0 %307
        %v309 = vsel %vm290, %v286, 0.0
        %310 = vadd.xlane.f32.xlu0 %v309
        %v311 = vpop.xlane.xlu0 %310
        %v312 = vsel %vm290, %v288, 0.0
        %313 = vadd.xlane.f32.xlu0 %v312
        %v314 = vpop.xlane.xlu0 %313
        %v315 = vsel %vm290, %v275, 0.0
        %316 = vadd.xlane.f32.xlu0 %v315
        %v317 = vpop.xlane.xlu0 %316
        %v318 = vsel %vm290, %v277, 0.0
        %319 = vadd.xlane.f32.xlu0 %v318
        %v320 = vpop.xlane.xlu0 %319
        %v321 = vsel %vm290, %v279, 0.0
        %322 = vadd.xlane.f32.xlu0 %v321
        %v323 = vpop.xlane.xlu0 %322
        %v324 = vsel %vm290, %v281, 0.0
        %325 = vadd.xlane.f32.xlu0 %v324
        %v326 = vpop.xlane.xlu0 %325
        %v327 = vsel %vm290, %v283, 0.0
        %328 = vadd.xlane.f32.xlu0 %v327
        %v329 = vpop.xlane.xlu0 %328
        %v330 = vsel %vm290, %v285, 0.0
        %331 = vadd.xlane.f32.xlu0 %v330
        %v332 = vpop.xlane.xlu0 %331
        %v333 = vsel %vm290, %v287, 0.0
        %334 = vadd.xlane.f32.xlu0 %v333
        %v335 = vpop.xlane.xlu0 %334
        %v336 = vsel %vm290, %v289, 0.0
        %337 = vadd.xlane.f32.xlu0 %v336
        %v338 = vpop.xlane.xlu0 %337
        %v339 = vadd.f32 %v293, %v317
        %v340 = vadd.f32 %v296, %v320
        %v341 = vadd.f32 %v299, %v323
        %v342 = vadd.f32 %v302, %v326
        %v343 = vadd.f32 %v305, %v329
        %v344 = vadd.f32 %v308, %v332
        %v345 = vadd.f32 %v311, %v335
        %v346 = vadd.f32 %v314, %v338
        %v347 = vmul.f32 %v274, %v274
        %v348 = vmul.f32 %v276, %v276
        %v349 = vmul.f32 %v278, %v278
        %v350 = vmul.f32 %v280, %v280
        %v351 = vmul.f32 %v282, %v282
        %v352 = vmul.f32 %v284, %v284
        %v353 = vmul.f32 %v286, %v286
        %v354 = vmul.f32 %v288, %v288
        %v355 = vsel %vm290, %v347, 0.0
        %356 = vadd.xlane.f32.xlu0 %v355
        %v357 = vpop.xlane.xlu0 %356
        %v358 = vsel %vm290, %v348, 0.0
        %359 = vadd.xlane.f32.xlu0 %v358
        %v360 = vpop.xlane.xlu0 %359
        %v361 = vsel %vm290, %v349, 0.0
        %362 = vadd.xlane.f32.xlu0 %v361
        %v363 = vpop.xlane.xlu0 %362
        %v364 = vsel %vm290, %v350, 0.0
        %365 = vadd.xlane.f32.xlu0 %v364
        %v366 = vpop.xlane.xlu0 %365
        %v367 = vsel %vm290, %v351, 0.0
        %368 = vadd.xlane.f32.xlu0 %v367
        %v369 = vpop.xlane.xlu0 %368
        %v370 = vsel %vm290, %v352, 0.0
        %371 = vadd.xlane.f32.xlu0 %v370
        %v372 = vpop.xlane.xlu0 %371
        %v373 = vsel %vm290, %v353, 0.0
        %374 = vadd.xlane.f32.xlu0 %v373
        %v375 = vpop.xlane.xlu0 %374
        %v376 = vsel %vm290, %v354, 0.0
        %377 = vadd.xlane.f32.xlu0 %v376
        %v378 = vpop.xlane.xlu0 %377
        %v379 = vmul.f32 %v275, %v275
        %v380 = vmul.f32 %v277, %v277
        %v381 = vmul.f32 %v279, %v279
        %v382 = vmul.f32 %v281, %v281
        %v383 = vmul.f32 %v283, %v283
        %v384 = vmul.f32 %v285, %v285
        %v385 = vmul.f32 %v287, %v287
        %v386 = vmul.f32 %v289, %v289
        %v387 = vsel %vm290, %v379, 0.0
        %388 = vadd.xlane.f32.xlu0 %v387
        %v389 = vpop.xlane.xlu0 %388
        %v390 = vsel %vm290, %v380, 0.0
        %391 = vadd.xlane.f32.xlu0 %v390
        %v392 = vpop.xlane.xlu0 %391
        %v393 = vsel %vm290, %v381, 0.0
        %394 = vadd.xlane.f32.xlu0 %v393
        %v395 = vpop.xlane.xlu0 %394
        %v396 = vsel %vm290, %v382, 0.0
        %397 = vadd.xlane.f32.xlu0 %v396
        %v398 = vpop.xlane.xlu0 %397
        %v399 = vsel %vm290, %v383, 0.0
        %400 = vadd.xlane.f32.xlu0 %v399
        %v401 = vpop.xlane.xlu0 %400
        %v402 = vsel %vm290, %v384, 0.0
        %403 = vadd.xlane.f32.xlu0 %v402
        %v404 = vpop.xlane.xlu0 %403
        %v405 = vsel %vm290, %v385, 0.0
        %406 = vadd.xlane.f32.xlu0 %v405
        %v407 = vpop.xlane.xlu0 %406
        %v408 = vsel %vm290, %v386, 0.0
        %409 = vadd.xlane.f32.xlu0 %v408
        %v410 = vpop.xlane.xlu0 %409
        %v411 = vadd.f32 %v357, %v389
        %v412 = vadd.f32 %v360, %v392
        %v413 = vadd.f32 %v363, %v395
        %v414 = vadd.f32 %v366, %v398
        %v415 = vadd.f32 %v369, %v401
        %v416 = vadd.f32 %v372, %v404
        %v417 = vadd.f32 %v375, %v407
        %v418 = vadd.f32 %v378, %v410
        %v419 = vmul.f32 %v339, 0.0078125
        %v420 = vmul.f32 %v340, 0.0078125
        %v421 = vmul.f32 %v341, 0.0078125
        %v422 = vmul.f32 %v342, 0.0078125
        %v423 = vmul.f32 %v343, 0.0078125
        %v424 = vmul.f32 %v344, 0.0078125
        %v425 = vmul.f32 %v345, 0.0078125
        %v426 = vmul.f32 %v346, 0.0078125
        %v427 = vmul.f32 %v411, 0.0078125
        %v428 = vmul.f32 %v412, 0.0078125
        %v429 = vmul.f32 %v413, 0.0078125
        %v430 = vmul.f32 %v414, 0.0078125
        %v431 = vmul.f32 %v415, 0.0078125
        %v432 = vmul.f32 %v416, 0.0078125
        %v433 = vmul.f32 %v417, 0.0078125
        %v434 = vmul.f32 %v418, 0.0078125
        %v435 = vmul.f32 %v419, %v419
        %v436 = vmul.f32 %v420, %v420
        %v437 = vmul.f32 %v421, %v421
        %v438 = vmul.f32 %v422, %v422
        %v439 = vmul.f32 %v423, %v423
        %v440 = vmul.f32 %v424, %v424
        %v441 = vmul.f32 %v425, %v425
        %v442 = vmul.f32 %v426, %v426
        %v443 = vsub.f32 %v427, %v435
        %v444 = vsub.f32 %v428, %v436
        %v445 = vsub.f32 %v429, %v437
        %v446 = vsub.f32 %v430, %v438
        %v447 = vsub.f32 %v431, %v439
        %v448 = vsub.f32 %v432, %v440
        %v449 = vsub.f32 %v433, %v441
        %v450 = vsub.f32 %v434, %v442
        %v451 = vmax.f32 %v443, 0.0
        %v452 = vmax.f32 %v444, 0.0
        %v453 = vmax.f32 %v445, 0.0
        %v454 = vmax.f32 %v446, 0.0
        %v455 = vmax.f32 %v447, 0.0
        %v456 = vmax.f32 %v448, 0.0
        %v457 = vmax.f32 %v449, 0.0
        %v458 = vmax.f32 %v450, 0.0
        %v459 = vadd.f32 %v451, 1e-05
        %v460 = vadd.f32 %v452, 1e-05
        %v461 = vadd.f32 %v453, 1e-05
        %v462 = vadd.f32 %v454, 1e-05
        %v463 = vadd.f32 %v455, 1e-05
        %v464 = vadd.f32 %v456, 1e-05
        %v465 = vadd.f32 %v457, 1e-05
        %v466 = vadd.f32 %v458, 1e-05
        %v467 = vrsqrt.pop %v459
        %v468 = vmul.f32 %v467, %v459
        %v469 = vmul.f32 %v468, %v467
        %v470 = vmul.f32 0.5, %v469
        %v471 = vsub.f32 1.5, %v470
        %v472 = vmul.f32 %v467, %v471
        %vm473 = vweird.f32 %v459
        %vm474 = vweird.f32 %v467
        %vm475 = vmor %vm473, %vm474
        %v476 = vsel %vm475, %v467, %v472
        %v477 = vrsqrt.pop %v460
        %v478 = vmul.f32 %v477, %v460
        %v479 = vmul.f32 %v478, %v477
        %v480 = vmul.f32 0.5, %v479
        %v481 = vsub.f32 1.5, %v480
        %v482 = vmul.f32 %v477, %v481
        %vm483 = vweird.f32 %v460
        %vm484 = vweird.f32 %v477
        %vm485 = vmor %vm483, %vm484
        %v486 = vsel %vm485, %v477, %v482
        %v487 = vrsqrt.pop %v461
        %v488 = vmul.f32 %v487, %v461
        %v489 = vmul.f32 %v488, %v487
        %v490 = vmul.f32 0.5, %v489
        %v491 = vsub.f32 1.5, %v490
        %v492 = vmul.f32 %v487, %v491
        %vm493 = vweird.f32 %v461
        %vm494 = vweird.f32 %v487
        %vm495 = vmor %vm493, %vm494
        %v496 = vsel %vm495, %v487, %v492
        %v497 = vrsqrt.pop %v462
        %v498 = vmul.f32 %v497, %v462
        %v499 = vmul.f32 %v498, %v497
        %v500 = vmul.f32 0.5, %v499
        %v501 = vsub.f32 1.5, %v500
        %v502 = vmul.f32 %v497, %v501
        %vm503 = vweird.f32 %v462
        %vm504 = vweird.f32 %v497
        %vm505 = vmor %vm503, %vm504
        %v506 = vsel %vm505, %v497, %v502
        %v507 = vrsqrt.pop %v463
        %v508 = vmul.f32 %v507, %v463
        %v509 = vmul.f32 %v508, %v507
        %v510 = vmul.f32 0.5, %v509
        %v511 = vsub.f32 1.5, %v510
        %v512 = vmul.f32 %v507, %v511
        %vm513 = vweird.f32 %v463
        %vm514 = vweird.f32 %v507
        %vm515 = vmor %vm513, %vm514
        %v516 = vsel %vm515, %v507, %v512
        %v517 = vrsqrt.pop %v464
        %v518 = vmul.f32 %v517, %v464
        %v519 = vmul.f32 %v518, %v517
        %v520 = vmul.f32 0.5, %v519
        %v521 = vsub.f32 1.5, %v520
        %v522 = vmul.f32 %v517, %v521
        %vm523 = vweird.f32 %v464
        %vm524 = vweird.f32 %v517
        %vm525 = vmor %vm523, %vm524
        %v526 = vsel %vm525, %v517, %v522
        %v527 = vrsqrt.pop %v465
        %v528 = vmul.f32 %v527, %v465
        %v529 = vmul.f32 %v528, %v527
        %v530 = vmul.f32 0.5, %v529
        %v531 = vsub.f32 1.5, %v530
        %v532 = vmul.f32 %v527, %v531
        %vm533 = vweird.f32 %v465
        %vm534 = vweird.f32 %v527
        %vm535 = vmor %vm533, %vm534
        %v536 = vsel %vm535, %v527, %v532
        %v537 = vrsqrt.pop %v466
        %v538 = vmul.f32 %v537, %v466
        %v539 = vmul.f32 %v538, %v537
        %v540 = vmul.f32 0.5, %v539
        %v541 = vsub.f32 1.5, %v540
        %v542 = vmul.f32 %v537, %v541
        %vm543 = vweird.f32 %v466
        %vm544 = vweird.f32 %v537
        %vm545 = vmor %vm543, %vm544
        %v546 = vsel %vm545, %v537, %v542
        %v547 = vld [vmem:[#allocation4] sm:$0x1]
        %v548 = vld [vmem:[#allocation4 + $0x1] sm:$0x1]
        %v549 = vld [vmem:[#allocation6] sm:$0x1]
        %v550 = vld [vmem:[#allocation6 + $0x1] sm:$0x1]
        %v551 = vsub.f32 %v274, %v419
        %v552 = vsub.f32 %v276, %v420
        %v553 = vsub.f32 %v278, %v421
        %v554 = vsub.f32 %v280, %v422
        %v555 = vsub.f32 %v282, %v423
        %v556 = vsub.f32 %v284, %v424
        %v557 = vsub.f32 %v286, %v425
        %v558 = vsub.f32 %v288, %v426
        %v559 = vmul.f32 %v551, %v476
        %v560 = vmul.f32 %v552, %v486
        %v561 = vmul.f32 %v553, %v496
        %v562 = vmul.f32 %v554, %v506
        %v563 = vmul.f32 %v555, %v516
        %v564 = vmul.f32 %v556, %v526
        %v565 = vmul.f32 %v557, %v536
        %v566 = vmul.f32 %v558, %v546
        %v568 = vperm.slane %v547, 0
        %v570 = vmul.f32 %v559, %v568
        %v571 = vmul.f32 %v560, %v568
        %v572 = vmul.f32 %v561, %v568
        %v573 = vmul.f32 %v562, %v568
        %v574 = vmul.f32 %v563, %v568
        %v575 = vmul.f32 %v564, %v568
        %v576 = vmul.f32 %v565, %v568
        %v577 = vmul.f32 %v566, %v568
        %v579 = vperm.slane %v549, 0
        %v581 = vadd.f32 %v570, %v579
        %v582 = vadd.f32 %v571, %v579
        %v583 = vadd.f32 %v572, %v579
        %v584 = vadd.f32 %v573, %v579
        %v585 = vadd.f32 %v574, %v579
        %v586 = vadd.f32 %v575, %v579
        %v587 = vadd.f32 %v576, %v579
        %v588 = vadd.f32 %v577, %v579
        %v589 = vsub.f32 %v275, %v419
        %v590 = vsub.f32 %v277, %v420
        %v591 = vsub.f32 %v279, %v421
        %v592 = vsub.f32 %v281, %v422
        %v593 = vsub.f32 %v283, %v423
        %v594 = vsub.f32 %v285, %v424
        %v595 = vsub.f32 %v287, %v425
        %v596 = vsub.f32 %v289, %v426
        %v597 = vmul.f32 %v589, %v476
        %v598 = vmul.f32 %v590, %v486
        %v599 = vmul.f32 %v591, %v496
        %v600 = vmul.f32 %v592, %v506
        %v601 = vmul.f32 %v593, %v516
        %v602 = vmul.f32 %v594, %v526
        %v603 = vmul.f32 %v595, %v536
        %v604 = vmul.f32 %v596, %v546
        %v606 = vperm.slane %v548, 0
        %v608 = vmul.f32 %v597, %v606
        %v609 = vmul.f32 %v598, %v606
        %v610 = vmul.f32 %v599, %v606
        %v611 = vmul.f32 %v600, %v606
        %v612 = vmul.f32 %v601, %v606
        %v613 = vmul.f32 %v602, %v606
        %v614 = vmul.f32 %v603, %v606
        %v615 = vmul.f32 %v604, %v606
        %v617 = vperm.slane %v550, 0
        %v619 = vadd.f32 %v608, %v617
        %v620 = vadd.f32 %v609, %v617
        %v621 = vadd.f32 %v610, %v617
        %v622 = vadd.f32 %v611, %v617
        %v623 = vadd.f32 %v612, %v617
        %v624 = vadd.f32 %v613, %v617
        %v625 = vadd.f32 %v614, %v617
        %v626 = vadd.f32 %v615, %v617
        %v627 = vpack.c.bf16 %v581, %v581
        %v628 = vpack.c.bf16 %v582, %v582
        %v629 = vpack.c.bf16 %v583, %v583
        %v630 = vpack.c.bf16 %v584, %v584
        %v631 = vpack.c.bf16 %v585, %v585
        %v632 = vpack.c.bf16 %v586, %v586
        %v633 = vpack.c.bf16 %v587, %v587
        %v634 = vpack.c.bf16 %v588, %v588
        %v635 = vpack.c.bf16 %v619, %v619
        %v636 = vpack.c.bf16 %v620, %v620
        %v637 = vpack.c.bf16 %v621, %v621
        %v638 = vpack.c.bf16 %v622, %v622
        %v639 = vpack.c.bf16 %v623, %v623
        %v640 = vpack.c.bf16 %v624, %v624
        %v641 = vpack.c.bf16 %v625, %v625
        %v642 = vpack.c.bf16 %v626, %v626
        %v643 = vld [vmem:[#allocation7] sm:$0xf]
        %v644 = vld [vmem:[#allocation7 + $0x4] sm:$0xf]
        %v645 = vld [vmem:[#allocation7 + $0x8] sm:$0xf]
        %v646 = vld [vmem:[#allocation7 + $0xc] sm:$0xf]
        %v647 = vld [vmem:[#allocation7 + $0x10] sm:$0xf]
        %v648 = vld [vmem:[#allocation7 + $0x14] sm:$0xf]
        %v649 = vld [vmem:[#allocation7 + $0x18] sm:$0xf]
        %v650 = vld [vmem:[#allocation7 + $0x1c] sm:$0xf]
        %s651 = scalar_lea.vmem [#allocation7], 32
        %v652 = vld [vmem:[%s651] sm:$0xf]
        %v653 = vld [vmem:[%s651 + $0x4] sm:$0xf]
        %v654 = vld [vmem:[%s651 + $0x8] sm:$0xf]
        %v655 = vld [vmem:[%s651 + $0xc] sm:$0xf]
        %v656 = vld [vmem:[%s651 + $0x10] sm:$0xf]
        %v657 = vld [vmem:[%s651 + $0x14] sm:$0xf]
        %v658 = vld [vmem:[%s651 + $0x18] sm:$0xf]
        %v659 = vld [vmem:[%s651 + $0x1c] sm:$0xf]
        %v668 = vunpack.c.l.b16 %v635
        %v669 = vunpack.c.l.b16 %v636
        %v670 = vunpack.c.l.b16 %v637
        %v671 = vunpack.c.l.b16 %v638
        %v672 = vunpack.c.l.b16 %v639
        %v673 = vunpack.c.l.b16 %v640
        %v674 = vunpack.c.l.b16 %v641
        %v675 = vunpack.c.l.b16 %v642
        %v676 = vpack.c.b16 %v669, %v668
        %v677 = vpack.c.b16 %v671, %v670
        %v678 = vpack.c.b16 %v673, %v672
        %v679 = vpack.c.b16 %v675, %v674
        %v688 = vunpack.c.l.b16 %v652
        %v689 = vunpack.c.l.b16 %v653
        %v690 = vunpack.c.l.b16 %v654
        %v691 = vunpack.c.l.b16 %v655
        %v692 = vunpack.c.l.b16 %v656
        %v693 = vunpack.c.l.b16 %v657
        %v694 = vunpack.c.l.b16 %v658
        %v695 = vunpack.c.l.b16 %v659
        %v696 = vpack.c.b16 %v689, %v688
        %v697 = vpack.c.b16 %v691, %v690
        %v698 = vpack.c.b16 %v693, %v692
        %v699 = vpack.c.b16 %v695, %v694
        %v705 = vsel %vm290, %v676, 0
        %v708 = vsel %vm290, %v677, 0
        %v711 = vsel %vm290, %v678, 0
        %v714 = vsel %vm290, %v679, 0
        %716 = vmatpush.bf16.msra.mxu0 0
        %717 = vmatpush.bf16.msra.mxu0 0
        %718 = vmatpush.bf16.msra.mxu0 0
        %719 = vmatpush.bf16.msra.mxu0 0
        %720 = vmatpush.bf16.msra.mxu0 %v699
        %721 = vmatpush.bf16.msra.mxu0 %v698
        %722 = vmatpush.bf16.msra.mxu0 %v697
        %723 = vmatpush.bf16.msra.mxu0 %v696
        %724 = vmatmul.bf16.gmra.mxu0 %v705
        %v725 = vpop.f32.mrf.mxu0
        %v726 = vadd.f32 0.0, %v725
        %v727 = vpop.f32.mrf.mxu0
        %v728 = vadd.f32 0.0, %v727
        %729 = vmatmul.bf16.gmra.mxu0 %v708
        %v730 = vpop.f32.mrf.mxu0
        %v731 = vadd.f32 0.0, %v730
        %v732 = vpop.f32.mrf.mxu0
        %v733 = vadd.f32 0.0, %v732
        %734 = vmatmul.bf16.gmra.mxu0 %v711
        %v735 = vpop.f32.mrf.mxu0
        %v736 = vadd.f32 0.0, %v735
        %v737 = vpop.f32.mrf.mxu0
        %v738 = vadd.f32 0.0, %v737
        %739 = vmatmul.bf16.gmra.mxu0 %v714
        %v740 = vpop.f32.mrf.mxu0
        %v741 = vadd.f32 0.0, %v740
        %v742 = vpop.f32.mrf.mxu0
        %v743 = vadd.f32 0.0, %v742
        %744 = vdwg.mxu0
        %v753 = vunpack.c.l.b16 %v627
        %v754 = vunpack.c.l.b16 %v628
        %v755 = vunpack.c.l.b16 %v629
        %v756 = vunpack.c.l.b16 %v630
        %v757 = vunpack.c.l.b16 %v631
        %v758 = vunpack.c.l.b16 %v632
        %v759 = vunpack.c.l.b16 %v633
        %v760 = vunpack.c.l.b16 %v634
        %v761 = vpack.c.b16 %v754, %v753
        %v762 = vpack.c.b16 %v756, %v755
        %v763 = vpack.c.b16 %v758, %v757
        %v764 = vpack.c.b16 %v760, %v759
        %v773 = vunpack.c.l.b16 %v643
        %v774 = vunpack.c.l.b16 %v644
        %v775 = vunpack.c.l.b16 %v645
        %v776 = vunpack.c.l.b16 %v646
        %v777 = vunpack.c.l.b16 %v647
        %v778 = vunpack.c.l.b16 %v648
        %v779 = vunpack.c.l.b16 %v649
        %v780 = vunpack.c.l.b16 %v650
        %v781 = vpack.c.b16 %v774, %v773
        %v782 = vpack.c.b16 %v776, %v775
        %v783 = vpack.c.b16 %v778, %v777
        %v784 = vpack.c.b16 %v780, %v779
        %v790 = vsel %vm290, %v761, 0
        %v793 = vsel %vm290, %v762, 0
        %v796 = vsel %vm290, %v763, 0
        %v799 = vsel %vm290, %v764, 0
        %801 = vmatpush.bf16.msra.mxu0 0
        %802 = vmatpush.bf16.msra.mxu0 0
        %803 = vmatpush.bf16.msra.mxu0 0
        %804 = vmatpush.bf16.msra.mxu0 0
        %805 = vmatpush.bf16.msra.mxu0 %v784
        %806 = vmatpush.bf16.msra.mxu0 %v783
        %807 = vmatpush.bf16.msra.mxu0 %v782
        %808 = vmatpush.bf16.msra.mxu0 %v781
        %809 = vmatmul.bf16.gmra.mxu0 %v790
        %v810 = vpop.f32.mrf.mxu0
        %v811 = vadd.f32 %v726, %v810
        %v812 = vpop.f32.mrf.mxu0
        %v813 = vadd.f32 %v728, %v812
        %814 = vmatmul.bf16.gmra.mxu0 %v793
        %v815 = vpop.f32.mrf.mxu0
        %v816 = vadd.f32 %v731, %v815
        %v817 = vpop.f32.mrf.mxu0
        %v818 = vadd.f32 %v733, %v817
        %819 = vmatmul.bf16.gmra.mxu0 %v796
        %v820 = vpop.f32.mrf.mxu0
        %v821 = vadd.f32 %v736, %v820
        %v822 = vpop.f32.mrf.mxu0
        %v823 = vadd.f32 %v738, %v822
        %824 = vmatmul.bf16.gmra.mxu0 %v799
        %v825 = vpop.f32.mrf.mxu0
        %v826 = vadd.f32 %v741, %v825
        %v827 = vpop.f32.mrf.mxu0
        %v828 = vadd.f32 %v743, %v827
        %829 = vdwg.mxu0
        %830 = vst.msk [vmem:[%s271] sm:$0xff] %vm290, %v811
        %831 = vst.msk [vmem:[%s271 + $0x8] sm:$0xff] %vm290, %v813
        %832 = vst.msk [vmem:[%s271 + $0x10] sm:$0xff] %vm290, %v816
        %833 = vst.msk [vmem:[%s271 + $0x18] sm:$0xff] %vm290, %v818
        %834 = vst.msk [vmem:[%s271 + $0x20] sm:$0xff] %vm290, %v821
        %835 = vst.msk [vmem:[%s271 + $0x28] sm:$0xff] %vm290, %v823
        %836 = vst.msk [vmem:[%s271 + $0x30] sm:$0xff] %vm290, %v826
        %837 = vst.msk [vmem:[%s271 + $0x38] sm:$0xff] %vm290, %v828
        %s838 = smul.u32 8, %s20
        %p839 = scmp.lt.s32.totalorder %s838, 15
        %s840 = scalar_select %p839, %s838, 15
        %s841 = smul.addr %s840, 8
        %s842 = scalar_lea.vmem %s4, %s841
        // Predicated region
        $region53: #{tpu_custom_call.1} parent=35 // pred_check
          %p843 = pneg %p127
        $region54: #{tpu_custom_call.1} parent=35 // pred_check_branch
          %845 = sbr.rel (%p843) target = $region56
        $region55: #{tpu_custom_call.1} parent=35 // pred_region
          %s846 = smul.u32 8, %s20
        $region56: #{tpu_custom_call.1} parent=35 // pred_fallthru
          _
      $region36: #{tpu_custom_call.1} parent=5 // pred_fallthru
        _
      %p847 = scmp.le.s32.totalorder 2, %s15
      // Predicated region
      $region57: #{tpu_custom_call.1} parent=5 // pred_check
        %p848 = pneg %p847
      $region58: #{tpu_custom_call.1} parent=5 // pred_check_branch
        %850 = sbr.rel (%p848) target = $region60
      $region59: #{tpu_custom_call.1} parent=5 // pred_region
        %s851 = ssub.s32 %s15, 2
        // Predicated region
        $region61: #{tpu_custom_call.1} parent=59 // pred_check
          %p852 = pneg %p133
        $region62: #{tpu_custom_call.1} parent=59 // pred_check_branch
          %854 = sbr.rel (%p852) target = $region64
        $region63: #{tpu_custom_call.1} parent=59 // pred_region
          %s855 = smul.u32 8, %s21
          %p856 = scmp.lt.s32.totalorder %s855, 15
          %s857 = scalar_select %p856, %s855, 15
          %s858 = smul.addr %s857, 8
          %s859 = scalar_lea.vmem %s4, %s858
        $region64: #{tpu_custom_call.1} parent=59 // pred_fallthru
          _
      $region60: #{tpu_custom_call.1} parent=5 // pred_fallthru
        _
    $region6: #{tpu_custom_call.1} parent=1 // loop_footer
      %s19 = sadd.s32 1, %s15
    $region7: #{tpu_custom_call.1} parent=1 // loop_footer_branch
      %14 = sbr.rel target = $region3
    $region8: #{tpu_custom_call.1} parent=1 // loop_exit
      _
    %860 = vsyncpa [#allocation3], 1
    %s861 = scalar_lea.sflag [#allocation3], 1
    %862 = vsyncpa %s861, 1
    %863 = vsyncpa [#allocation5], 1
    %864 = vsyncpa [#allocation8], 1

</llo_original>
